<compile_context>
chip_gen: v7x
topology: tpu7x:2x2x1
jax: 0.10.0
libtpu: 0.0.40
codegen_flags: <defaults>
</compile_context>

<pallas_src>
import jax
import jax.numpy as jnp
from jax.experimental import pallas as pl
from jax.experimental.pallas import tpu as pltpu


# ----------------------------------------------------------------------------
# helpers
# ----------------------------------------------------------------------------
def _round_up(x: int, m: int) -> int:
    return ((x + m - 1) // m) * m


# Sized for the tightest generation (v7x: 64 MiB VMEM per TC, 32 MiB scoped
# default). v5e/v6e have 128 MiB physical so the same tiles fit with headroom.
_SCORE_PIPE_BUDGET = 28 * 1024 * 1024   # dbl-buffered item tiles + output tiles
_SCORE_TILE_TARGET = 16 * 1024          # item rows / tile (review: sweep 8k-32k)
_MAX_TILE_B = 128                       # batch rows / tile in the scoring grid


def _choose_tile_items(n_items: int, d: int, item_bytes: int,
                       tile_b: int = _MAX_TILE_B,
                       target: int = _SCORE_TILE_TARGET,
                       budget: int = _SCORE_PIPE_BUDGET) -> int:
    """Item-tile rows (multiple of 256) such that the double-buffered item
    tiles plus double-buffered f32 output tiles stay under the pipelining
    VMEM budget.  Called with the *worst-case* tile_b so the result is
    batch-independent (the catalog is padded to it once at model init)."""
    per_row = 2 * d * item_bytes + 2 * tile_b * 4
    cap = max(256, (budget // per_row) // 256 * 256)
    tile = min(target, cap)
    if n_items <= tile:
        return _round_up(max(n_items, 256), 256)
    return tile


# ----------------------------------------------------------------------------
# encode(): user representation = user embedding + mean-pooled item sequence
# ----------------------------------------------------------------------------
def _encode_kernel(seq_ref, user_ref, out_ref):
    # seq_ref : [TB, L, D] bf16   item-sequence embeddings
    # user_ref: [TB, D]    f32    user-id embeddings
    # out_ref : [TB, D]    bf16   user representation (MXU-ready)
    pooled = jnp.mean(seq_ref[...].astype(jnp.float32), axis=1)      # [TB, D]
    out_ref[...] = (user_ref[...] + pooled).astype(out_ref.dtype)


def encode(seq_embds, user_embds):
    """[B, L, D] bf16, [B, D] f32 -> [B, D] bf16 user representation."""
    B, L, D = seq_embds.shape
    # bf16 packs two rows per sublane -> pad batch to a multiple of 16.
    B16 = _round_up(max(B, 16), 16)
    # Tile over batch so one block (+ its f32 upcast temp) stays well inside
    # v5e's 16 MiB / v7x's 32 MiB scoped VMEM at production B*L*D.
    per_row = L * D * (2 + 4) + D * (4 + 2) * 2
    tb_cap = max(16, ((8 * 1024 * 1024) // per_row) // 16 * 16)
    tile_b = min(B16, 256, tb_cap)
    B_pad = _round_up(B16, tile_b)
    if B_pad != B:
        seq_embds = jnp.pad(seq_embds, ((0, B_pad - B), (0, 0), (0, 0)))
        user_embds = jnp.pad(user_embds, ((0, B_pad - B), (0, 0)))

    out = pl.pallas_call(
        _encode_kernel,
        out_shape=jax.ShapeDtypeStruct((B_pad, D), jnp.bfloat16),
        grid=(B_pad // tile_b,),
        in_specs=[
            pl.BlockSpec((tile_b, L, D), lambda i: (i, 0, 0)),
            pl.BlockSpec((tile_b, D), lambda i: (i, 0)),
        ],
        out_specs=pl.BlockSpec((tile_b, D), lambda i: (i, 0)),
        compiler_params=pltpu.CompilerParams(
            dimension_semantics=("parallel",),
            vmem_limit_bytes=32 * 1024 * 1024,
        ),
    )(seq_embds, user_embds)
    return out[:B]


# ----------------------------------------------------------------------------
# recommend_from_full(): streaming scoring matmul against the full item table
# ----------------------------------------------------------------------------
def _score_kernel(user_ref, item_ref, out_ref):
    # user_ref: [TB, D]   bf16  (one batch tile)
    # item_ref: [TN, D]   bf16  (one streamed tile of the item table)
    # out_ref : [TB, TN]  f32   scores for this tile (lane-dense)
    # Contract the last dim of both operands: no explicit .T of the item tile,
    # so no per-step XLU transpose / VMEM copy on the DMA-bound path.
    out_ref[...] = jax.lax.dot_general(
        user_ref[...], item_ref[...],
        dimension_numbers=(((1,), (1,)), ((), ())),
        preferred_element_type=jnp.float32,
    )


def recommend_from_full(user_repr, item_table_padded, num_items):
    """Full-ranking scores: [B, num_items] float32.

    `item_table_padded` is the bf16 catalog already padded (at model init) to
    a multiple of the item tile, so no per-call table copy is needed."""
    B, D = user_repr.shape
    N_pad, D2 = item_table_padded.shape
    assert D == D2

    # Batch tiling: multiple of 16 (bf16 sublane packing), capped at 128 rows.
    B16 = _round_up(max(B, 16), 16)
    tile_b = min(B16, _MAX_TILE_B)
    B_pad = _round_up(B16, tile_b)
    if B_pad != B:
        user_repr = jnp.pad(user_repr, ((0, B_pad - B), (0, 0)))

    item_bytes = item_table_padded.dtype.itemsize
    # Same (batch-independent, worst-case tile_b) choice as at model init.
    tile_items = _choose_tile_items(N_pad, D, item_bytes)
    assert N_pad % tile_items == 0, "catalog must be pre-padded at model init"

    # VMEM footprint of the pipelined tiles; derive the limit from it rather
    # than a fixed clamp (tile choice already keeps this inside v7x's budget).
    needed = (2 * tile_items * D * item_bytes      # double-buffered item tiles
              + 2 * tile_b * tile_items * 4        # double-buffered output tiles
              + 2 * tile_b * D * item_bytes)       # double-buffered user tiles
    vmem_limit = int(min(max(needed + (8 << 20), 32 << 20), 56 << 20))

    grid = (B_pad // tile_b, N_pad // tile_items)   # batch outer, items inner
    n_passes = grid[0]                              # table streamed once/batch tile

    scores = pl.pallas_call(
        _score_kernel,
        out_shape=jax.ShapeDtypeStruct((B_pad, N_pad), jnp.float32),
        grid_spec=pltpu.PrefetchScalarGridSpec(
            num_scalar_prefetch=0,
            grid=grid,
            in_specs=[
                pl.BlockSpec((tile_b, D), lambda i, j: (i, 0)),        # user tile
                pl.BlockSpec((tile_items, D), lambda i, j: (j, 0)),    # item tile
            ],
            out_specs=pl.BlockSpec((tile_b, tile_items), lambda i, j: (i, j)),
        ),
        compiler_params=pltpu.CompilerParams(
            dimension_semantics=("parallel", "parallel"),
            vmem_limit_bytes=vmem_limit,
        ),
        cost_estimate=pl.CostEstimate(
            flops=2 * B_pad * D * N_pad,
            transcendentals=0,
            bytes_accessed=(n_passes * N_pad * D * item_bytes   # stream item table
                            + B_pad * N_pad * 4                 # write scores
                            + B_pad * D * item_bytes),          # user repr
        ),
    )(user_repr, item_table_padded)

    # Skip the extra slice copy entirely when nothing was padded.
    if B_pad == B and N_pad == num_items:
        return scores
    # Padded catalog columns (zero embeddings) score 0 and are dropped here.
    return scores[:B, :num_items]


# ----------------------------------------------------------------------------
# Minimal concrete instantiation of the RecSysArch eval path
# ----------------------------------------------------------------------------
class RecSysArchPallas:

    def __init__(self, num_users, num_items, embed_dim, key):
        ku, ki = jax.random.split(key)
        # reset_parameters(): nn.Embedding -> normal(std=1e-4)
        self.user_table = 1e-4 * jax.random.normal(
            ku, (num_users, embed_dim), dtype=jnp.float32)
        # Item table stored/streamed in bf16 (scoring is HBM-bandwidth-bound;
        # bf16 halves traffic and is MXU-native on v5e/v6e/v7x).
        # TODO(synk): optional fp8 (v7x) / int8+per-row-scale (v5e/v6e) item
        #             storage would halve the dominant byte stream again.
        item_f32 = 1e-4 * jax.random.normal(
            ki, (num_items, embed_dim), dtype=jnp.float32)
        item_bf16 = item_f32.astype(jnp.bfloat16)

        self.num_items = num_items
        # Pad the catalog ONCE at init to a multiple of the item tile so the
        # scoring kernel never re-pads (no per-forward full-table copy) and
        # every grid block is fully dense / unmasked.
        tile_items = _choose_tile_items(num_items, embed_dim,
                                        item_bf16.dtype.itemsize)
        n_pad = _round_up(num_items, tile_items)
        if n_pad != num_items:
            item_bf16 = jnp.pad(item_bf16, ((0, n_pad - num_items), (0, 0)))
        self.item_table = item_bf16      # [N_pad, D] bf16; rows >= num_items are 0

    def forward(self, data, ranking="full"):
        # eval mode, ranking == 'full'  -> recommend_from_full(data)
        user_ids = data["user_id"]       # [B]
        item_seq = data["item_seq"]      # [B, L]  (ISeq field)

        # Glue: embedding gathers stay in plain JAX (tiny at these B, L).
        user_embds = jnp.take(self.user_table, user_ids, axis=0)    # [B, D] f32
        seq_embds = jnp.take(self.item_table, item_seq, axis=0)     # [B, L, D] bf16

        user_repr = encode(seq_embds, user_embds)                   # [B, D] bf16

        if ranking == "full":
            return recommend_from_full(user_repr, self.item_table, self.num_items)
        # TODO(synk): fit() / recommend_from_pool() / sure_*pipe() are abstract
        #             (NotImplementedError) in the source module; not implemented.
        raise NotImplementedError


if __name__ == "__main__":
    key = jax.random.PRNGKey(0)
    k_model, k_uid, k_seq = jax.random.split(key, 3)

    NUM_USERS, NUM_ITEMS, EMBED_DIM = 64, 256, 128
    BATCH, SEQ_LEN = 8, 8

    model = RecSysArchPallas(NUM_USERS, NUM_ITEMS, EMBED_DIM, k_model)

    data = {
        "user_id": jax.random.randint(k_uid, (BATCH,), 0, NUM_USERS),
        "item_seq": jax.random.randint(k_seq, (BATCH, SEQ_LEN), 0, NUM_ITEMS),
    }

    scores = model.forward(data, ranking="full")
    scores = jax.block_until_ready(scores)

    # Reference check against plain JAX (same bf16 quantization as the kernel).
    item_tbl = model.item_table[:NUM_ITEMS]
    user_e = jnp.take(model.user_table, data["user_id"], axis=0)                 # f32
    seq_e = jnp.take(model.item_table, data["item_seq"], axis=0).astype(jnp.float32)
    user_repr_ref = (user_e + jnp.mean(seq_e, axis=1)).astype(jnp.bfloat16)
    ref = jax.lax.dot_general(
        user_repr_ref.astype(jnp.float32),
        item_tbl.astype(jnp.float32),
        dimension_numbers=(((1,), (1,)), ((), ())),
        preferred_element_type=jnp.float32,
    )

    assert scores.shape == (BATCH, NUM_ITEMS), scores.shape
    assert jnp.allclose(scores, ref, rtol=1e-2, atol=1e-8), (
        float(jnp.max(jnp.abs(scores - ref))))

    print("KERNEL_OK")
</pallas_src>

<mosaic_0001>
module attributes {stable_mosaic.version = 11 : i64} {
  func.func @_encode_kernel(%arg0: i32, %arg1: memref<16x8x128xbf16, #tpu.memory_space<vmem>>, %arg2: memref<16x128xf32, #tpu.memory_space<vmem>>, %arg3: memref<16x128xbf16, #tpu.memory_space<vmem>>) attributes {dimension_semantics = [#tpu.dimension_semantics<parallel>], iteration_bounds = array<i64: 1>, scalar_prefetch = 0 : i64, scratch_operands = 0 : i64, tpu.core_type = #tpu.core_type<tc>, window_params = [{transform_indices = @transform_0, window_bounds = array<i64: 16, 8, 128>}, {transform_indices = @transform_1, window_bounds = array<i64: 16, 128>}, {transform_indices = @transform_2, window_bounds = array<i64: 16, 128>}]} {
    %c0 = arith.constant 0 : index
    %c0_0 = arith.constant 0 : index
    %c0_1 = arith.constant 0 : index
    %0 = vector.load %arg1[%c0, %c0_0, %c0_1] : memref<16x8x128xbf16, #tpu.memory_space<vmem>>, vector<16x8x128xbf16>
    %1 = arith.extf %0 : vector<16x8x128xbf16> to vector<16x8x128xf32>
    %cst = arith.constant dense<0.000000e+00> : vector<16x128xf32>
    %2 = vector.multi_reduction <add>, %1, %cst [1] : vector<16x8x128xf32> to vector<16x128xf32>
    %cst_2 = arith.constant 8.000000e+00 : f32
    %3 = vector.broadcast %cst_2 : f32 to vector<16x128xf32>
    %4 = arith.divf %2, %3 : vector<16x128xf32>
    %c0_3 = arith.constant 0 : index
    %c0_4 = arith.constant 0 : index
    %5 = vector.load %arg2[%c0_3, %c0_4] : memref<16x128xf32, #tpu.memory_space<vmem>>, vector<16x128xf32>
    %6 = arith.addf %5, %4 : vector<16x128xf32>
    %7 = arith.truncf %6 : vector<16x128xf32> to vector<16x128xbf16>
    %c0_5 = arith.constant 0 : index
    %c0_6 = arith.constant 0 : index
    %8 = vector.load %arg3[%c0_5, %c0_6] : memref<16x128xbf16, #tpu.memory_space<vmem>>, vector<16x128xbf16>
    tpu.vector_store %arg3[%c0_5, %c0_6], %7 {strides = array<i32>} : memref<16x128xbf16, #tpu.memory_space<vmem>>, vector<16x128xbf16>,
    return
  }
  func.func @transform_0(%arg0: i32) -> (i32, i32, i32) {
    %c0_i32 = arith.constant 0 : i32
    %c0_i32_0 = arith.constant 0 : i32
    %c0_i32_1 = arith.constant 0 : i32
    return %arg0, %c0_i32, %c0_i32_0 : i32, i32, i32
  }
  func.func @transform_1(%arg0: i32) -> (i32, i32) {
    %c0_i32 = arith.constant 0 : i32
    %c0_i32_0 = arith.constant 0 : i32
    return %arg0, %c0_i32 : i32, i32
  }
  func.func @transform_2(%arg0: i32) -> (i32, i32) {
    %c0_i32 = arith.constant 0 : i32
    %c0_i32_0 = arith.constant 0 : i32
    return %arg0, %c0_i32 : i32, i32
  }
}

</mosaic_0001>

<llo_original>
// kernel: tpu_custom_call.1
$region0: #{tpu_custom_call.1}
  #allocation0 [shape = 'u32[]', space=smem, size = 0x4, offset = 0x4, fixed_abs, tag = 'smem constant byte address 0x4 - core index']
  #allocation1 [shape = 'u32[144,128]{1,0:T(1,128)}', space=vmem, size = 0x12000, scoped, tag = 'internal scratch']
  %s0 = inlined_call_operand.hbm [shape: bf16[16,8,128], index: 0, kind: input, shape index: {}]
  %s1 = inlined_call_operand.hbm [shape: f32[16,128], index: 1, kind: input, shape index: {}]
  %s2 = inlined_call_operand.hbm [shape: bf16[16,128], index: 2, kind: output, shape index: {}]
  %s3 = sld [smem:[#allocation0]]
  $region26: #{tpu_custom_call.1} parent=0
    _
  %s5 = ssub.s32 1, %s3
  %s6 = scalar_select 0, %s5, %s3
  $region1: #{tpu_custom_call.1} parent=0
    #allocation2 [shape = 'u8[32768]{0}', space=vmem, size = 0x8000, scoped, tag = 'input window, operand 0, single buffered']
    #allocation3 [shape = 's32[1]{0}', space=sflag, size = 0x4, scoped, tag = 'scoped memory for tpu_custom_call.1']
    #allocation4 [shape = 's32[1]{0}', space=sflag, size = 0x4, scoped, tag = 'scoped memory for tpu_custom_call.1']
    #allocation5 [shape = 'u8[8192]{0}', space=vmem, size = 0x2000, scoped, tag = 'input window, operand 1, single buffered']
    #allocation6 [shape = 's32[1]{0}', space=sflag, size = 0x4, scoped, tag = 'scoped memory for tpu_custom_call.1']
    #allocation7 [shape = 'u8[4096]{0}', space=vmem, size = 0x1000, scoped, tag = 'output window, operand 0, single buffered']
    %7 = vsyncpa [#allocation3], 0
    %8 = vsyncpa [#allocation6], 0
    %9 = vsyncpa [#allocation4], 0
    // Predicated region
    $region2: #{tpu_custom_call.1} parent=1 // pred_check
      _
    $region3: #{tpu_custom_call.1} parent=1 // pred_check_branch
      %11 = sbr.rel (0) target = $region5
    $region4: #{tpu_custom_call.1} parent=1 // pred_region
      %s13 = ssub.s32 1024, 1024
      %14 = vsyncadd [#allocation3], %s13
      %s15 = sshll.u32 [#allocation2], 4
      %s16 = int_to_ptr.vmem [resolvable:$true] %s15
      %21 = dma.hbm_to_vmem [thread:$0]  %s0, 1024, %s16, [#allocation3], 64, 64, 4
    $region5: #{tpu_custom_call.1} parent=1 // pred_fallthru
      _
    // Predicated region
    $region6: #{tpu_custom_call.1} parent=1 // pred_check
      _
    $region7: #{tpu_custom_call.1} parent=1 // pred_check_branch
      %23 = sbr.rel (0) target = $region9
    $region8: #{tpu_custom_call.1} parent=1 // pred_region
      %s25 = ssub.s32 256, 256
      %26 = vsyncadd [#allocation6], %s25
      %s27 = sshll.u32 [#allocation5], 4
      %s28 = int_to_ptr.vmem [resolvable:$true] %s27
      %33 = dma.hbm_to_vmem [thread:$0]  %s1, 256, %s28, [#allocation6], 128, 128, 8
    $region9: #{tpu_custom_call.1} parent=1 // pred_fallthru
      _
    // Predicated region
    $region10: #{tpu_custom_call.1} parent=1 // pred_check
      _
    $region11: #{tpu_custom_call.1} parent=1 // pred_check_branch
      %35 = sbr.rel (0) target = $region13
    $region12: #{tpu_custom_call.1} parent=1 // pred_region
      %36 = dma.done [#allocation3], 1024
    $region13: #{tpu_custom_call.1} parent=1 // pred_fallthru
      _
    // Predicated region
    $region14: #{tpu_custom_call.1} parent=1 // pred_check
      _
    $region15: #{tpu_custom_call.1} parent=1 // pred_check_branch
      %38 = sbr.rel (0) target = $region17
    $region16: #{tpu_custom_call.1} parent=1 // pred_region
      %39 = dma.done [#allocation6], 256
    $region17: #{tpu_custom_call.1} parent=1 // pred_fallthru
      _
    %v40 = vld [vmem:[#allocation2] sm:$0xf]
    %v41 = vld [vmem:[#allocation2 + $0x4] sm:$0xf]
    %v42 = vld [vmem:[#allocation2 + $0x8] sm:$0xf]
    %v43 = vld [vmem:[#allocation2 + $0xc] sm:$0xf]
    %v44 = vld [vmem:[#allocation2 + $0x10] sm:$0xf]
    %v45 = vld [vmem:[#allocation2 + $0x14] sm:$0xf]
    %v46 = vld [vmem:[#allocation2 + $0x18] sm:$0xf]
    %v47 = vld [vmem:[#allocation2 + $0x1c] sm:$0xf]
    %v48 = vld [vmem:[#allocation2 + $0x20] sm:$0xf]
    %v49 = vld [vmem:[#allocation2 + $0x24] sm:$0xf]
    %v50 = vld [vmem:[#allocation2 + $0x28] sm:$0xf]
    %v51 = vld [vmem:[#allocation2 + $0x2c] sm:$0xf]
    %v52 = vld [vmem:[#allocation2 + $0x30] sm:$0xf]
    %v53 = vld [vmem:[#allocation2 + $0x34] sm:$0xf]
    %v54 = vld [vmem:[#allocation2 + $0x38] sm:$0xf]
    %v55 = vld [vmem:[#allocation2 + $0x3c] sm:$0xf]
    %v56 = vunpack.c.l.bf16 %v40
    %v57 = vunpack.c.l.bf16 %v41
    %v58 = vunpack.c.l.bf16 %v42
    %v59 = vunpack.c.l.bf16 %v43
    %v60 = vunpack.c.l.bf16 %v44
    %v61 = vunpack.c.l.bf16 %v45
    %v62 = vunpack.c.l.bf16 %v46
    %v63 = vunpack.c.l.bf16 %v47
    %v64 = vunpack.c.l.bf16 %v48
    %v65 = vunpack.c.l.bf16 %v49
    %v66 = vunpack.c.l.bf16 %v50
    %v67 = vunpack.c.l.bf16 %v51
    %v68 = vunpack.c.l.bf16 %v52
    %v69 = vunpack.c.l.bf16 %v53
    %v70 = vunpack.c.l.bf16 %v54
    %v71 = vunpack.c.l.bf16 %v55
    %v72 = vrot.slane %v56, 4
    %v73 = vadd.f32 %v56, %v72
    %v74 = vrot.slane %v73, 2
    %v75 = vadd.f32 %v73, %v74
    %v76 = vrot.slane %v75, 1
    %v77 = vadd.f32 %v75, %v76
    %v78 = vrot.slane %v57, 4
    %v79 = vadd.f32 %v57, %v78
    %v80 = vrot.slane %v79, 2
    %v81 = vadd.f32 %v79, %v80
    %v82 = vrot.slane %v81, 1
    %v83 = vadd.f32 %v81, %v82
    %v84 = vrot.slane %v58, 4
    %v85 = vadd.f32 %v58, %v84
    %v86 = vrot.slane %v85, 2
    %v87 = vadd.f32 %v85, %v86
    %v88 = vrot.slane %v87, 1
    %v89 = vadd.f32 %v87, %v88
    %v90 = vrot.slane %v59, 4
    %v91 = vadd.f32 %v59, %v90
    %v92 = vrot.slane %v91, 2
    %v93 = vadd.f32 %v91, %v92
    %v94 = vrot.slane %v93, 1
    %v95 = vadd.f32 %v93, %v94
    %v96 = vrot.slane %v60, 4
    %v97 = vadd.f32 %v60, %v96
    %v98 = vrot.slane %v97, 2
    %v99 = vadd.f32 %v97, %v98
    %v100 = vrot.slane %v99, 1
    %v101 = vadd.f32 %v99, %v100
    %v102 = vrot.slane %v61, 4
    %v103 = vadd.f32 %v61, %v102
    %v104 = vrot.slane %v103, 2
    %v105 = vadd.f32 %v103, %v104
    %v106 = vrot.slane %v105, 1
    %v107 = vadd.f32 %v105, %v106
    %v108 = vrot.slane %v62, 4
    %v109 = vadd.f32 %v62, %v108
    %v110 = vrot.slane %v109, 2
    %v111 = vadd.f32 %v109, %v110
    %v112 = vrot.slane %v111, 1
    %v113 = vadd.f32 %v111, %v112
    %v114 = vrot.slane %v63, 4
    %v115 = vadd.f32 %v63, %v114
    %v116 = vrot.slane %v115, 2
    %v117 = vadd.f32 %v115, %v116
    %v118 = vrot.slane %v117, 1
    %v119 = vadd.f32 %v117, %v118
    %v120 = vrot.slane %v64, 4
    %v121 = vadd.f32 %v64, %v120
    %v122 = vrot.slane %v121, 2
    %v123 = vadd.f32 %v121, %v122
    %v124 = vrot.slane %v123, 1
    %v125 = vadd.f32 %v123, %v124
    %v126 = vrot.slane %v65, 4
    %v127 = vadd.f32 %v65, %v126
    %v128 = vrot.slane %v127, 2
    %v129 = vadd.f32 %v127, %v128
    %v130 = vrot.slane %v129, 1
    %v131 = vadd.f32 %v129, %v130
    %v132 = vrot.slane %v66, 4
    %v133 = vadd.f32 %v66, %v132
    %v134 = vrot.slane %v133, 2
    %v135 = vadd.f32 %v133, %v134
    %v136 = vrot.slane %v135, 1
    %v137 = vadd.f32 %v135, %v136
    %v138 = vrot.slane %v67, 4
    %v139 = vadd.f32 %v67, %v138
    %v140 = vrot.slane %v139, 2
    %v141 = vadd.f32 %v139, %v140
    %v142 = vrot.slane %v141, 1
    %v143 = vadd.f32 %v141, %v142
    %v144 = vrot.slane %v68, 4
    %v145 = vadd.f32 %v68, %v144
    %v146 = vrot.slane %v145, 2
    %v147 = vadd.f32 %v145, %v146
    %v148 = vrot.slane %v147, 1
    %v149 = vadd.f32 %v147, %v148
    %v150 = vrot.slane %v69, 4
    %v151 = vadd.f32 %v69, %v150
    %v152 = vrot.slane %v151, 2
    %v153 = vadd.f32 %v151, %v152
    %v154 = vrot.slane %v153, 1
    %v155 = vadd.f32 %v153, %v154
    %v156 = vrot.slane %v70, 4
    %v157 = vadd.f32 %v70, %v156
    %v158 = vrot.slane %v157, 2
    %v159 = vadd.f32 %v157, %v158
    %v160 = vrot.slane %v159, 1
    %v161 = vadd.f32 %v159, %v160
    %v162 = vrot.slane %v71, 4
    %v163 = vadd.f32 %v71, %v162
    %v164 = vrot.slane %v163, 2
    %v165 = vadd.f32 %v163, %v164
    %v166 = vrot.slane %v165, 1
    %v167 = vadd.f32 %v165, %v166
    %v168 = vrcp.pop 8.0
    %v169 = vmul.f32 %v77, %v168
    %v170 = vmul.f32 %v83, %v168
    %v171 = vmul.f32 %v89, %v168
    %v172 = vmul.f32 %v95, %v168
    %v173 = vmul.f32 %v101, %v168
    %v174 = vmul.f32 %v107, %v168
    %v175 = vmul.f32 %v113, %v168
    %v176 = vmul.f32 %v119, %v168
    %v177 = vmul.f32 %v125, %v168
    %v178 = vmul.f32 %v131, %v168
    %v179 = vmul.f32 %v137, %v168
    %v180 = vmul.f32 %v143, %v168
    %v181 = vmul.f32 %v149, %v168
    %v182 = vmul.f32 %v155, %v168
    %v183 = vmul.f32 %v161, %v168
    %v184 = vmul.f32 %v167, %v168
    %v185 = vld [vmem:[#allocation5] sm:$0xff]
    %v186 = vld [vmem:[#allocation5 + $0x8] sm:$0xff]
    %vm203 = vcmask 1041409
    %v204 = vsel %vm203, %v170, %v169
    %vm205 = vcmask 1042434
    %v206 = vsel %vm205, %v171, %v204
    %vm207 = vcmask 1043459
    %v208 = vsel %vm207, %v172, %v206
    %vm209 = vcmask 1044484
    %v210 = vsel %vm209, %v173, %v208
    %vm211 = vcmask 1045509
    %v212 = vsel %vm211, %v174, %v210
    %vm213 = vcmask 1046534
    %v214 = vsel %vm213, %v175, %v212
    %vm215 = vcmask 1047559
    %v216 = vsel %vm215, %v176, %v214
    %v217 = vsel %vm203, %v178, %v177
    %v218 = vsel %vm205, %v179, %v217
    %v219 = vsel %vm207, %v180, %v218
    %v220 = vsel %vm209, %v181, %v219
    %v221 = vsel %vm211, %v182, %v220
    %v222 = vsel %vm213, %v183, %v221
    %v223 = vsel %vm215, %v184, %v222
    %v226 = vadd.f32 %v185, %v216
    %v227 = vadd.f32 %v186, %v223
    %v228 = vpack.c.bf16 %v227, %v226
    %v230 = vunpack.c.l.b16 %v228
    %v231 = vunpack.c.h.b16 %v228
    %v232 = vpack.c.b16 %v230, %v230
    %v233 = vpack.c.b16 %v231, %v231
    %236 = vst [vmem:[#allocation7] sm:$0xf] %v232
    %237 = vst [vmem:[#allocation7 + $0x4] sm:$0xf] %v233
    // Predicated region
    $region18: #{tpu_custom_call.1} parent=1 // pred_check
      _
    $region19: #{tpu_custom_call.1} parent=1 // pred_check_branch
      %239 = sbr.rel (0) target = $region21
    $region20: #{tpu_custom_call.1} parent=1 // pred_region
      %s241 = ssub.s32 128, 128
      %242 = vsyncadd [#allocation4], %s241
      %s243 = sshll.u32 [#allocation7], 4
      %s244 = int_to_ptr.vmem [resolvable:$true] %s243
      %249 = dma.vmem_to_hbm [thread:$0]  %s244, 128, %s2, [#allocation4], 64, 64, 4
    $region21: #{tpu_custom_call.1} parent=1 // pred_fallthru
      _
    // Predicated region
    $region22: #{tpu_custom_call.1} parent=1 // pred_check
      _
    $region23: #{tpu_custom_call.1} parent=1 // pred_check_branch
      %251 = sbr.rel (0) target = $region25
    $region24: #{tpu_custom_call.1} parent=1 // pred_region
      %252 = dma.done [#allocation4], 128
    $region25: #{tpu_custom_call.1} parent=1 // pred_fallthru
      _
    %253 = vsyncpa [#allocation3], 1
    %254 = vsyncpa [#allocation6], 1
    %255 = vsyncpa [#allocation4], 1

</llo_original>
